<compile_context>
chip_gen: v7x
topology: tpu7x:2x2x1
jax: 0.10.0
libtpu: 0.0.40
codegen_flags: <defaults>
</compile_context>

<pallas_src>
import functools

import jax
import jax.numpy as jnp
from jax.experimental import pallas as pl
from jax.experimental.pallas import tpu as pltpu


def decoder_rnn_kernel(x_ref, wih_ref, whh_ref, b_ref, wo_ref, bo_ref,
                       out_ref, h_all_sc, *, T, B, H):
    # x_ref   : (T*B, E)   time-major inputs flattened to rows (row = t*B + b), B padded to 8
    # wih_ref : (E, 4H)    fused input->gate weights, gate order (i, f, o, g)
    # whh_ref : (H, 4H)    fused hidden->gate weights, gate order (i, f, o, g)
    # b_ref   : (1, 4H)    combined bias (b_ih + b_hh)
    # wo_ref  : (H, Vp)    vocab projection, V padded to a multiple of 128
    # bo_ref  : (1, Vp)
    # out_ref : (T*B, Vp)  logits, written once (lane-dense, unmasked stores)
    # h_all_sc: (T*B, H)   VMEM scratch collecting h_t for the batched vocab projection

    # Hoisted, non-recurrent input projection: ONE MXU-shaped matmul for all timesteps.
    x_proj = (jnp.dot(x_ref[...], wih_ref[...], preferred_element_type=jnp.float32)
              + b_ref[...])                                   # (T*B, 4H)

    whh = whh_ref[...]

    h = jnp.zeros((B, H), jnp.float32)
    c = jnp.zeros((B, H), jnp.float32)

    # T is tiny & static: a fully unrolled Python loop keeps every slice static and
    # gives the scheduler cross-timestep visibility (overlap MXU push with gate math).
    for t in range(T):
        g_t = x_proj[t * B:(t + 1) * B, :]                    # (B, 4H) static slice
        if t > 0:  # h == 0 at t == 0 -> the recurrent matmul would be exactly zero
            g_t = g_t + jnp.dot(h, whh, preferred_element_type=jnp.float32)

        sig = jax.nn.sigmoid(g_t[:, :3 * H])                  # one EUP pass for i, f, o
        i_g = sig[:, 0 * H:1 * H]
        f_g = sig[:, 1 * H:2 * H]
        o_g = sig[:, 2 * H:3 * H]
        g_g = jnp.tanh(g_t[:, 3 * H:4 * H])

        c = f_g * c + i_g * g_g
        h = o_g * jnp.tanh(c)

        h_all_sc[t * B:(t + 1) * B, :] = h                    # static, aligned store

    # Batched vocab projection: one MXU matmul + one lane-dense output store.
    out_ref[...] = (jnp.dot(h_all_sc[...], wo_ref[...],
                            preferred_element_type=jnp.float32)
                    + bo_ref[...])


def decoder_rnn_forward(params, features, captions):
    """PyTorch-equivalent forward: features (B, E) f32, captions (B, Tc) int32.
    Returns logits (B, Tc, V)."""
    embed_tbl = params["embedding"]          # (vocab, E)
    W_ih = params["W_ih"]                    # (4, E, H)  torch gate order (i, f, g, o)
    W_hh = params["W_hh"]                    # (4, H, H)
    bias = params["bias"]                    # (4, 1, H)  combined b_ih + b_hh
    W_out = params["W_out"]                  # (H, V)
    b_out = params["b_out"]                  # (1, V)

    B, E = features.shape
    H = W_hh.shape[-1]
    V = W_out.shape[-1]

    # Glue (plain JAX): embedding gather + concat image feature as timestep 0.
    embeds = jnp.take(embed_tbl, captions[:, :-1], axis=0)          # (B, Tc-1, E)
    inputs_bf = jnp.concatenate([features[:, None, :], embeds], 1)  # (B, T, E)
    T = inputs_bf.shape[1]

    # Time-major, batch padded to a sublane multiple (8), T folded into the row dim.
    Bp = ((B + 7) // 8) * 8
    x_tm = jnp.transpose(inputs_bf, (1, 0, 2))                      # (T, B, E)
    x_tm = jnp.pad(x_tm, ((0, 0), (0, Bp - B), (0, 0)))             # (T, Bp, E)
    x2d = x_tm.reshape(T * Bp, E)                                   # (T*Bp, E)

    # Fuse the 4 gates into one matmul; reorder (i,f,g,o) -> (i,f,o,g) so sigmoid is
    # one contiguous 3H slice and tanh the trailing H slice.
    perm = jnp.array([0, 1, 3, 2])
    wih_cat = jnp.transpose(W_ih[perm], (1, 0, 2)).reshape(E, 4 * H)   # (E, 4H)
    whh_cat = jnp.transpose(W_hh[perm], (1, 0, 2)).reshape(H, 4 * H)   # (H, 4H)
    b_cat = jnp.transpose(bias[perm], (1, 0, 2)).reshape(1, 4 * H)     # (1, 4H)

    # Pad vocab dim to a lane multiple (128) so the output store is unmasked.
    Vp = ((V + 127) // 128) * 128
    wo_p = jnp.pad(W_out, ((0, 0), (0, Vp - V)))                       # (H, Vp)
    bo_p = jnp.pad(b_out, ((0, 0), (0, Vp - V)))                       # (1, Vp)

    kernel = functools.partial(decoder_rnn_kernel, T=T, B=Bp, H=H)

    # Single kernel invocation (no grid): all operands are a few KB and sit in VMEM.
    # TODO(synk): at production sizes (H>=1024, V>=32k) tile the vocab projection over
    # a V grid axis (and cast weights to bf16) so W_out is not fully resident in VMEM.
    out2d = pl.pallas_call(
        kernel,
        out_shape=jax.ShapeDtypeStruct((T * Bp, Vp), jnp.float32),
        in_specs=[pl.BlockSpec(memory_space=pltpu.MemorySpace.VMEM)] * 6,
        out_specs=pl.BlockSpec(memory_space=pltpu.MemorySpace.VMEM),
        scratch_shapes=[pltpu.VMEM((T * Bp, H), jnp.float32)],
    )(x2d, wih_cat, whh_cat, b_cat, wo_p, bo_p)

    out_tm = out2d.reshape(T, Bp, Vp)[:, :B, :V]                    # (T, B, V)
    return jnp.transpose(out_tm, (1, 0, 2))                         # (B, T, V)


def reference_forward(params, features, captions):
    """Pure-JAX reference matching torch LSTM semantics (gate order i, f, g, o)."""
    embed_tbl = params["embedding"]
    W_ih, W_hh, bias = params["W_ih"], params["W_hh"], params["bias"]
    W_out, b_out = params["W_out"], params["b_out"]
    B, E = features.shape
    H = W_hh.shape[-1]

    embeds = jnp.take(embed_tbl, captions[:, :-1], axis=0)
    inputs = jnp.concatenate([features[:, None, :], embeds], 1)     # (B, T, E)

    def step(carry, x_t):
        h, c = carry

        def g(gi):
            return x_t @ W_ih[gi] + h @ W_hh[gi] + bias[gi]

        i = jax.nn.sigmoid(g(0))
        f = jax.nn.sigmoid(g(1))
        gg = jnp.tanh(g(2))
        o = jax.nn.sigmoid(g(3))
        c = f * c + i * gg
        h = o * jnp.tanh(c)
        return (h, c), h @ W_out + b_out

    h0 = jnp.zeros((B, H), jnp.float32)
    c0 = jnp.zeros((B, H), jnp.float32)
    _, outs = jax.lax.scan(step, (h0, c0), jnp.transpose(inputs, (1, 0, 2)))
    return jnp.transpose(outs, (1, 0, 2))


def init_params(key, embed_size, hidden_size, vocab_size):
    ks = jax.random.split(key, 6)
    scale = 0.1
    return {
        "embedding": scale * jax.random.normal(ks[0], (vocab_size, embed_size), jnp.float32),
        "W_ih": scale * jax.random.normal(ks[1], (4, embed_size, hidden_size), jnp.float32),
        "W_hh": scale * jax.random.normal(ks[2], (4, hidden_size, hidden_size), jnp.float32),
        "bias": scale * jax.random.normal(ks[3], (4, 1, hidden_size), jnp.float32),
        "W_out": scale * jax.random.normal(ks[4], (hidden_size, vocab_size), jnp.float32),
        "b_out": scale * jax.random.normal(ks[5], (1, vocab_size), jnp.float32),
    }


if __name__ == "__main__":
    B = 2            # batch
    E = 32           # embed_size
    H = 32           # hidden_size  (4H = 128 -> lane-dense fused gates)
    V = 64           # vocab_size   (padded to 128 inside the wrapper)
    Tc = 8           # caption length -> LSTM runs Tc timesteps (feature + Tc-1 tokens)

    key = jax.random.PRNGKey(0)
    k_par, k_feat, k_cap = jax.random.split(key, 3)

    params = init_params(k_par, E, H, V)
    features = jax.random.normal(k_feat, (B, E), jnp.float32)
    captions = jax.random.randint(k_cap, (B, Tc), 0, V, jnp.int32)

    out = decoder_rnn_forward(params, features, captions)
    out = jax.block_until_ready(out)

    ref = reference_forward(params, features, captions)
    assert out.shape == (B, Tc, V), out.shape
    assert jnp.allclose(out, ref, atol=1e-4, rtol=1e-4), "mismatch vs reference"

    print("KERNEL_OK")
</pallas_src>

<mosaic_0001>
module attributes {stable_mosaic.version = 11 : i64} {
  func.func @decoder_rnn_kernel(%arg0: memref<64x32xf32, #tpu.memory_space<vmem>>, %arg1: memref<32x128xf32, #tpu.memory_space<vmem>>, %arg2: memref<32x128xf32, #tpu.memory_space<vmem>>, %arg3: memref<1x128xf32, #tpu.memory_space<vmem>>, %arg4: memref<32x128xf32, #tpu.memory_space<vmem>>, %arg5: memref<1x128xf32, #tpu.memory_space<vmem>>, %arg6: memref<64x128xf32, #tpu.memory_space<vmem>>, %arg7: memref<64x32xf32, #tpu.memory_space<vmem>>) attributes {dimension_semantics = [], scalar_prefetch = 0 : i64, scratch_operands = 1 : i64, tpu.core_type = #tpu.core_type<tc>} {
    %c0 = arith.constant 0 : index
    %c0_0 = arith.constant 0 : index
    %0 = vector.load %arg0[%c0, %c0_0] : memref<64x32xf32, #tpu.memory_space<vmem>>, vector<64x32xf32>
    %c0_1 = arith.constant 0 : index
    %c0_2 = arith.constant 0 : index
    %1 = vector.load %arg1[%c0_1, %c0_2] : memref<32x128xf32, #tpu.memory_space<vmem>>, vector<32x128xf32>
    %cst = arith.constant dense<0.000000e+00> : vector<64x128xf32>
    %2 = tpu.matmul %0, %1, %cst {dimension_numbers = #tpu.dot_dimension_numbers<[1], [0], [0], [1], [0, 0, 1, 1], [], []>} : vector<64x32xf32>, vector<32x128xf32>, vector<64x128xf32> -> vector<64x128xf32>
    %c0_3 = arith.constant 0 : index
    %c0_4 = arith.constant 0 : index
    %3 = vector.load %arg3[%c0_3, %c0_4] : memref<1x128xf32, #tpu.memory_space<vmem>>, vector<1x128xf32>
    %4 = vector.broadcast %3 : vector<1x128xf32> to vector<64x128xf32>
    %5 = arith.addf %2, %4 : vector<64x128xf32>
    %c0_5 = arith.constant 0 : index
    %c0_6 = arith.constant 0 : index
    %6 = vector.load %arg2[%c0_5, %c0_6] : memref<32x128xf32, #tpu.memory_space<vmem>>, vector<32x128xf32>
    %cst_7 = arith.constant 0.000000e+00 : f32
    %7 = vector.broadcast %cst_7 : f32 to vector<8x32xf32>
    %8 = vector.extract_strided_slice %5 {offsets = [0, 0], sizes = [8, 128], strides = [1, 1]} : vector<64x128xf32> to vector<8x128xf32>
    %9 = vector.extract_strided_slice %8 {offsets = [0, 0], sizes = [8, 96], strides = [1, 1]} : vector<8x128xf32> to vector<8x96xf32>
    %10 = arith.negf %9 : vector<8x96xf32>
    %11 = math.exp %10 : vector<8x96xf32>
    %cst_8 = arith.constant 1.000000e+00 : f32
    %12 = vector.broadcast %cst_8 : f32 to vector<8x96xf32>
    %13 = arith.addf %12, %11 : vector<8x96xf32>
    %14 = arith.divf %12, %13 : vector<8x96xf32>
    %15 = vector.extract_strided_slice %14 {offsets = [0, 0], sizes = [8, 32], strides = [1, 1]} : vector<8x96xf32> to vector<8x32xf32>
    %16 = vector.extract_strided_slice %14 {offsets = [0, 32], sizes = [8, 32], strides = [1, 1]} : vector<8x96xf32> to vector<8x32xf32>
    %17 = vector.extract_strided_slice %14 {offsets = [0, 64], sizes = [8, 32], strides = [1, 1]} : vector<8x96xf32> to vector<8x32xf32>
    %18 = vector.extract_strided_slice %8 {offsets = [0, 96], sizes = [8, 32], strides = [1, 1]} : vector<8x128xf32> to vector<8x32xf32>
    %19 = math.tanh %18 : vector<8x32xf32>
    %20 = arith.mulf %16, %7 : vector<8x32xf32>
    %21 = arith.mulf %15, %19 : vector<8x32xf32>
    %22 = arith.addf %20, %21 : vector<8x32xf32>
    %23 = math.tanh %22 : vector<8x32xf32>
    %24 = arith.mulf %17, %23 : vector<8x32xf32>
    %c0_9 = arith.constant 0 : index
    %c0_10 = arith.constant 0 : index
    %25 = vector.load %arg7[%c0_9, %c0_10] : memref<64x32xf32, #tpu.memory_space<vmem>>, vector<8x32xf32>
    tpu.vector_store %arg7[%c0_9, %c0_10], %24 {strides = array<i32>} : memref<64x32xf32, #tpu.memory_space<vmem>>, vector<8x32xf32>,
    %26 = vector.extract_strided_slice %5 {offsets = [8, 0], sizes = [8, 128], strides = [1, 1]} : vector<64x128xf32> to vector<8x128xf32>
    %cst_11 = arith.constant dense<0.000000e+00> : vector<8x128xf32>
    %27 = tpu.matmul %24, %6, %cst_11 {dimension_numbers = #tpu.dot_dimension_numbers<[1], [0], [0], [1], [0, 0, 1, 1], [], []>} : vector<8x32xf32>, vector<32x128xf32>, vector<8x128xf32> -> vector<8x128xf32>
    %28 = arith.addf %26, %27 : vector<8x128xf32>
    %29 = vector.extract_strided_slice %28 {offsets = [0, 0], sizes = [8, 96], strides = [1, 1]} : vector<8x128xf32> to vector<8x96xf32>
    %30 = arith.negf %29 : vector<8x96xf32>
    %31 = math.exp %30 : vector<8x96xf32>
    %cst_12 = arith.constant 1.000000e+00 : f32
    %32 = vector.broadcast %cst_12 : f32 to vector<8x96xf32>
    %33 = arith.addf %32, %31 : vector<8x96xf32>
    %34 = arith.divf %32, %33 : vector<8x96xf32>
    %35 = vector.extract_strided_slice %34 {offsets = [0, 0], sizes = [8, 32], strides = [1, 1]} : vector<8x96xf32> to vector<8x32xf32>
    %36 = vector.extract_strided_slice %34 {offsets = [0, 32], sizes = [8, 32], strides = [1, 1]} : vector<8x96xf32> to vector<8x32xf32>
    %37 = vector.extract_strided_slice %34 {offsets = [0, 64], sizes = [8, 32], strides = [1, 1]} : vector<8x96xf32> to vector<8x32xf32>
    %38 = vector.extract_strided_slice %28 {offsets = [0, 96], sizes = [8, 32], strides = [1, 1]} : vector<8x128xf32> to vector<8x32xf32>
    %39 = math.tanh %38 : vector<8x32xf32>
    %40 = arith.mulf %36, %22 : vector<8x32xf32>
    %41 = arith.mulf %35, %39 : vector<8x32xf32>
    %42 = arith.addf %40, %41 : vector<8x32xf32>
    %43 = math.tanh %42 : vector<8x32xf32>
    %44 = arith.mulf %37, %43 : vector<8x32xf32>
    %c8 = arith.constant 8 : index
    %c0_13 = arith.constant 0 : index
    %45 = vector.load %arg7[%c8, %c0_13] : memref<64x32xf32, #tpu.memory_space<vmem>>, vector<8x32xf32>
    tpu.vector_store %arg7[%c8, %c0_13], %44 {strides = array<i32>} : memref<64x32xf32, #tpu.memory_space<vmem>>, vector<8x32xf32>,
    %46 = vector.extract_strided_slice %5 {offsets = [16, 0], sizes = [8, 128], strides = [1, 1]} : vector<64x128xf32> to vector<8x128xf32>
    %cst_14 = arith.constant dense<0.000000e+00> : vector<8x128xf32>
    %47 = tpu.matmul %44, %6, %cst_14 {dimension_numbers = #tpu.dot_dimension_numbers<[1], [0], [0], [1], [0, 0, 1, 1], [], []>} : vector<8x32xf32>, vector<32x128xf32>, vector<8x128xf32> -> vector<8x128xf32>
    %48 = arith.addf %46, %47 : vector<8x128xf32>
    %49 = vector.extract_strided_slice %48 {offsets = [0, 0], sizes = [8, 96], strides = [1, 1]} : vector<8x128xf32> to vector<8x96xf32>
    %50 = arith.negf %49 : vector<8x96xf32>
    %51 = math.exp %50 : vector<8x96xf32>
    %cst_15 = arith.constant 1.000000e+00 : f32
    %52 = vector.broadcast %cst_15 : f32 to vector<8x96xf32>
    %53 = arith.addf %52, %51 : vector<8x96xf32>
    %54 = arith.divf %52, %53 : vector<8x96xf32>
    %55 = vector.extract_strided_slice %54 {offsets = [0, 0], sizes = [8, 32], strides = [1, 1]} : vector<8x96xf32> to vector<8x32xf32>
    %56 = vector.extract_strided_slice %54 {offsets = [0, 32], sizes = [8, 32], strides = [1, 1]} : vector<8x96xf32> to vector<8x32xf32>
    %57 = vector.extract_strided_slice %54 {offsets = [0, 64], sizes = [8, 32], strides = [1, 1]} : vector<8x96xf32> to vector<8x32xf32>
    %58 = vector.extract_strided_slice %48 {offsets = [0, 96], sizes = [8, 32], strides = [1, 1]} : vector<8x128xf32> to vector<8x32xf32>
    %59 = math.tanh %58 : vector<8x32xf32>
    %60 = arith.mulf %56, %42 : vector<8x32xf32>
    %61 = arith.mulf %55, %59 : vector<8x32xf32>
    %62 = arith.addf %60, %61 : vector<8x32xf32>
    %63 = math.tanh %62 : vector<8x32xf32>
    %64 = arith.mulf %57, %63 : vector<8x32xf32>
    %c16 = arith.constant 16 : index
    %c0_16 = arith.constant 0 : index
    %65 = vector.load %arg7[%c16, %c0_16] : memref<64x32xf32, #tpu.memory_space<vmem>>, vector<8x32xf32>
    tpu.vector_store %arg7[%c16, %c0_16], %64 {strides = array<i32>} : memref<64x32xf32, #tpu.memory_space<vmem>>, vector<8x32xf32>,
    %66 = vector.extract_strided_slice %5 {offsets = [24, 0], sizes = [8, 128], strides = [1, 1]} : vector<64x128xf32> to vector<8x128xf32>
    %cst_17 = arith.constant dense<0.000000e+00> : vector<8x128xf32>
    %67 = tpu.matmul %64, %6, %cst_17 {dimension_numbers = #tpu.dot_dimension_numbers<[1], [0], [0], [1], [0, 0, 1, 1], [], []>} : vector<8x32xf32>, vector<32x128xf32>, vector<8x128xf32> -> vector<8x128xf32>
    %68 = arith.addf %66, %67 : vector<8x128xf32>
    %69 = vector.extract_strided_slice %68 {offsets = [0, 0], sizes = [8, 96], strides = [1, 1]} : vector<8x128xf32> to vector<8x96xf32>
    %70 = arith.negf %69 : vector<8x96xf32>
    %71 = math.exp %70 : vector<8x96xf32>
    %cst_18 = arith.constant 1.000000e+00 : f32
    %72 = vector.broadcast %cst_18 : f32 to vector<8x96xf32>
    %73 = arith.addf %72, %71 : vector<8x96xf32>
    %74 = arith.divf %72, %73 : vector<8x96xf32>
    %75 = vector.extract_strided_slice %74 {offsets = [0, 0], sizes = [8, 32], strides = [1, 1]} : vector<8x96xf32> to vector<8x32xf32>
    %76 = vector.extract_strided_slice %74 {offsets = [0, 32], sizes = [8, 32], strides = [1, 1]} : vector<8x96xf32> to vector<8x32xf32>
    %77 = vector.extract_strided_slice %74 {offsets = [0, 64], sizes = [8, 32], strides = [1, 1]} : vector<8x96xf32> to vector<8x32xf32>
    %78 = vector.extract_strided_slice %68 {offsets = [0, 96], sizes = [8, 32], strides = [1, 1]} : vector<8x128xf32> to vector<8x32xf32>
    %79 = math.tanh %78 : vector<8x32xf32>
    %80 = arith.mulf %76, %62 : vector<8x32xf32>
    %81 = arith.mulf %75, %79 : vector<8x32xf32>
    %82 = arith.addf %80, %81 : vector<8x32xf32>
    %83 = math.tanh %82 : vector<8x32xf32>
    %84 = arith.mulf %77, %83 : vector<8x32xf32>
    %c24 = arith.constant 24 : index
    %c0_19 = arith.constant 0 : index
    %85 = vector.load %arg7[%c24, %c0_19] : memref<64x32xf32, #tpu.memory_space<vmem>>, vector<8x32xf32>
    tpu.vector_store %arg7[%c24, %c0_19], %84 {strides = array<i32>} : memref<64x32xf32, #tpu.memory_space<vmem>>, vector<8x32xf32>,
    %86 = vector.extract_strided_slice %5 {offsets = [32, 0], sizes = [8, 128], strides = [1, 1]} : vector<64x128xf32> to vector<8x128xf32>
    %cst_20 = arith.constant dense<0.000000e+00> : vector<8x128xf32>
    %87 = tpu.matmul %84, %6, %cst_20 {dimension_numbers = #tpu.dot_dimension_numbers<[1], [0], [0], [1], [0, 0, 1, 1], [], []>} : vector<8x32xf32>, vector<32x128xf32>, vector<8x128xf32> -> vector<8x128xf32>
    %88 = arith.addf %86, %87 : vector<8x128xf32>
    %89 = vector.extract_strided_slice %88 {offsets = [0, 0], sizes = [8, 96], strides = [1, 1]} : vector<8x128xf32> to vector<8x96xf32>
    %90 = arith.negf %89 : vector<8x96xf32>
    %91 = math.exp %90 : vector<8x96xf32>
    %cst_21 = arith.constant 1.000000e+00 : f32
    %92 = vector.broadcast %cst_21 : f32 to vector<8x96xf32>
    %93 = arith.addf %92, %91 : vector<8x96xf32>
    %94 = arith.divf %92, %93 : vector<8x96xf32>
    %95 = vector.extract_strided_slice %94 {offsets = [0, 0], sizes = [8, 32], strides = [1, 1]} : vector<8x96xf32> to vector<8x32xf32>
    %96 = vector.extract_strided_slice %94 {offsets = [0, 32], sizes = [8, 32], strides = [1, 1]} : vector<8x96xf32> to vector<8x32xf32>
    %97 = vector.extract_strided_slice %94 {offsets = [0, 64], sizes = [8, 32], strides = [1, 1]} : vector<8x96xf32> to vector<8x32xf32>
    %98 = vector.extract_strided_slice %88 {offsets = [0, 96], sizes = [8, 32], strides = [1, 1]} : vector<8x128xf32> to vector<8x32xf32>
    %99 = math.tanh %98 : vector<8x32xf32>
    %100 = arith.mulf %96, %82 : vector<8x32xf32>
    %101 = arith.mulf %95, %99 : vector<8x32xf32>
    %102 = arith.addf %100, %101 : vector<8x32xf32>
    %103 = math.tanh %102 : vector<8x32xf32>
    %104 = arith.mulf %97, %103 : vector<8x32xf32>
    %c32 = arith.constant 32 : index
    %c0_22 = arith.constant 0 : index
    %105 = vector.load %arg7[%c32, %c0_22] : memref<64x32xf32, #tpu.memory_space<vmem>>, vector<8x32xf32>
    tpu.vector_store %arg7[%c32, %c0_22], %104 {strides = array<i32>} : memref<64x32xf32, #tpu.memory_space<vmem>>, vector<8x32xf32>,
    %106 = vector.extract_strided_slice %5 {offsets = [40, 0], sizes = [8, 128], strides = [1, 1]} : vector<64x128xf32> to vector<8x128xf32>
    %cst_23 = arith.constant dense<0.000000e+00> : vector<8x128xf32>
    %107 = tpu.matmul %104, %6, %cst_23 {dimension_numbers = #tpu.dot_dimension_numbers<[1], [0], [0], [1], [0, 0, 1, 1], [], []>} : vector<8x32xf32>, vector<32x128xf32>, vector<8x128xf32> -> vector<8x128xf32>
    %108 = arith.addf %106, %107 : vector<8x128xf32>
    %109 = vector.extract_strided_slice %108 {offsets = [0, 0], sizes = [8, 96], strides = [1, 1]} : vector<8x128xf32> to vector<8x96xf32>
    %110 = arith.negf %109 : vector<8x96xf32>
    %111 = math.exp %110 : vector<8x96xf32>
    %cst_24 = arith.constant 1.000000e+00 : f32
    %112 = vector.broadcast %cst_24 : f32 to vector<8x96xf32>
    %113 = arith.addf %112, %111 : vector<8x96xf32>
    %114 = arith.divf %112, %113 : vector<8x96xf32>
    %115 = vector.extract_strided_slice %114 {offsets = [0, 0], sizes = [8, 32], strides = [1, 1]} : vector<8x96xf32> to vector<8x32xf32>
    %116 = vector.extract_strided_slice %114 {offsets = [0, 32], sizes = [8, 32], strides = [1, 1]} : vector<8x96xf32> to vector<8x32xf32>
    %117 = vector.extract_strided_slice %114 {offsets = [0, 64], sizes = [8, 32], strides = [1, 1]} : vector<8x96xf32> to vector<8x32xf32>
    %118 = vector.extract_strided_slice %108 {offsets = [0, 96], sizes = [8, 32], strides = [1, 1]} : vector<8x128xf32> to vector<8x32xf32>
    %119 = math.tanh %118 : vector<8x32xf32>
    %120 = arith.mulf %116, %102 : vector<8x32xf32>
    %121 = arith.mulf %115, %119 : vector<8x32xf32>
    %122 = arith.addf %120, %121 : vector<8x32xf32>
    %123 = math.tanh %122 : vector<8x32xf32>
    %124 = arith.mulf %117, %123 : vector<8x32xf32>
    %c40 = arith.constant 40 : index
    %c0_25 = arith.constant 0 : index
    %125 = vector.load %arg7[%c40, %c0_25] : memref<64x32xf32, #tpu.memory_space<vmem>>, vector<8x32xf32>
    tpu.vector_store %arg7[%c40, %c0_25], %124 {strides = array<i32>} : memref<64x32xf32, #tpu.memory_space<vmem>>, vector<8x32xf32>,
    %126 = vector.extract_strided_slice %5 {offsets = [48, 0], sizes = [8, 128], strides = [1, 1]} : vector<64x128xf32> to vector<8x128xf32>
    %cst_26 = arith.constant dense<0.000000e+00> : vector<8x128xf32>
    %127 = tpu.matmul %124, %6, %cst_26 {dimension_numbers = #tpu.dot_dimension_numbers<[1], [0], [0], [1], [0, 0, 1, 1], [], []>} : vector<8x32xf32>, vector<32x128xf32>, vector<8x128xf32> -> vector<8x128xf32>
    %128 = arith.addf %126, %127 : vector<8x128xf32>
    %129 = vector.extract_strided_slice %128 {offsets = [0, 0], sizes = [8, 96], strides = [1, 1]} : vector<8x128xf32> to vector<8x96xf32>
    %130 = arith.negf %129 : vector<8x96xf32>
    %131 = math.exp %130 : vector<8x96xf32>
    %cst_27 = arith.constant 1.000000e+00 : f32
    %132 = vector.broadcast %cst_27 : f32 to vector<8x96xf32>
    %133 = arith.addf %132, %131 : vector<8x96xf32>
    %134 = arith.divf %132, %133 : vector<8x96xf32>
    %135 = vector.extract_strided_slice %134 {offsets = [0, 0], sizes = [8, 32], strides = [1, 1]} : vector<8x96xf32> to vector<8x32xf32>
    %136 = vector.extract_strided_slice %134 {offsets = [0, 32], sizes = [8, 32], strides = [1, 1]} : vector<8x96xf32> to vector<8x32xf32>
    %137 = vector.extract_strided_slice %134 {offsets = [0, 64], sizes = [8, 32], strides = [1, 1]} : vector<8x96xf32> to vector<8x32xf32>
    %138 = vector.extract_strided_slice %128 {offsets = [0, 96], sizes = [8, 32], strides = [1, 1]} : vector<8x128xf32> to vector<8x32xf32>
    %139 = math.tanh %138 : vector<8x32xf32>
    %140 = arith.mulf %136, %122 : vector<8x32xf32>
    %141 = arith.mulf %135, %139 : vector<8x32xf32>
    %142 = arith.addf %140, %141 : vector<8x32xf32>
    %143 = math.tanh %142 : vector<8x32xf32>
    %144 = arith.mulf %137, %143 : vector<8x32xf32>
    %c48 = arith.constant 48 : index
    %c0_28 = arith.constant 0 : index
    %145 = vector.load %arg7[%c48, %c0_28] : memref<64x32xf32, #tpu.memory_space<vmem>>, vector<8x32xf32>
    tpu.vector_store %arg7[%c48, %c0_28], %144 {strides = array<i32>} : memref<64x32xf32, #tpu.memory_space<vmem>>, vector<8x32xf32>,
    %146 = vector.extract_strided_slice %5 {offsets = [56, 0], sizes = [8, 128], strides = [1, 1]} : vector<64x128xf32> to vector<8x128xf32>
    %cst_29 = arith.constant dense<0.000000e+00> : vector<8x128xf32>
    %147 = tpu.matmul %144, %6, %cst_29 {dimension_numbers = #tpu.dot_dimension_numbers<[1], [0], [0], [1], [0, 0, 1, 1], [], []>} : vector<8x32xf32>, vector<32x128xf32>, vector<8x128xf32> -> vector<8x128xf32>
    %148 = arith.addf %146, %147 : vector<8x128xf32>
    %149 = vector.extract_strided_slice %148 {offsets = [0, 0], sizes = [8, 96], strides = [1, 1]} : vector<8x128xf32> to vector<8x96xf32>
    %150 = arith.negf %149 : vector<8x96xf32>
    %151 = math.exp %150 : vector<8x96xf32>
    %cst_30 = arith.constant 1.000000e+00 : f32
    %152 = vector.broadcast %cst_30 : f32 to vector<8x96xf32>
    %153 = arith.addf %152, %151 : vector<8x96xf32>
    %154 = arith.divf %152, %153 : vector<8x96xf32>
    %155 = vector.extract_strided_slice %154 {offsets = [0, 0], sizes = [8, 32], strides = [1, 1]} : vector<8x96xf32> to vector<8x32xf32>
    %156 = vector.extract_strided_slice %154 {offsets = [0, 32], sizes = [8, 32], strides = [1, 1]} : vector<8x96xf32> to vector<8x32xf32>
    %157 = vector.extract_strided_slice %154 {offsets = [0, 64], sizes = [8, 32], strides = [1, 1]} : vector<8x96xf32> to vector<8x32xf32>
    %158 = vector.extract_strided_slice %148 {offsets = [0, 96], sizes = [8, 32], strides = [1, 1]} : vector<8x128xf32> to vector<8x32xf32>
    %159 = math.tanh %158 : vector<8x32xf32>
    %160 = arith.mulf %156, %142 : vector<8x32xf32>
    %161 = arith.mulf %155, %159 : vector<8x32xf32>
    %162 = arith.addf %160, %161 : vector<8x32xf32>
    %163 = math.tanh %162 : vector<8x32xf32>
    %164 = arith.mulf %157, %163 : vector<8x32xf32>
    %c56 = arith.constant 56 : index
    %c0_31 = arith.constant 0 : index
    %165 = vector.load %arg7[%c56, %c0_31] : memref<64x32xf32, #tpu.memory_space<vmem>>, vector<8x32xf32>
    tpu.vector_store %arg7[%c56, %c0_31], %164 {strides = array<i32>} : memref<64x32xf32, #tpu.memory_space<vmem>>, vector<8x32xf32>,
    %c0_32 = arith.constant 0 : index
    %c0_33 = arith.constant 0 : index
    %166 = vector.load %arg7[%c0_32, %c0_33] : memref<64x32xf32, #tpu.memory_space<vmem>>, vector<64x32xf32>
    %c0_34 = arith.constant 0 : index
    %c0_35 = arith.constant 0 : index
    %167 = vector.load %arg4[%c0_34, %c0_35] : memref<32x128xf32, #tpu.memory_space<vmem>>, vector<32x128xf32>
    %cst_36 = arith.constant dense<0.000000e+00> : vector<64x128xf32>
    %168 = tpu.matmul %166, %167, %cst_36 {dimension_numbers = #tpu.dot_dimension_numbers<[1], [0], [0], [1], [0, 0, 1, 1], [], []>} : vector<64x32xf32>, vector<32x128xf32>, vector<64x128xf32> -> vector<64x128xf32>
    %c0_37 = arith.constant 0 : index
    %c0_38 = arith.constant 0 : index
    %169 = vector.load %arg5[%c0_37, %c0_38] : memref<1x128xf32, #tpu.memory_space<vmem>>, vector<1x128xf32>
    %170 = vector.broadcast %169 : vector<1x128xf32> to vector<64x128xf32>
    %171 = arith.addf %168, %170 : vector<64x128xf32>
    %c0_39 = arith.constant 0 : index
    %c0_40 = arith.constant 0 : index
    %172 = vector.load %arg6[%c0_39, %c0_40] : memref<64x128xf32, #tpu.memory_space<vmem>>, vector<64x128xf32>
    tpu.vector_store %arg6[%c0_39, %c0_40], %171 {strides = array<i32>} : memref<64x128xf32, #tpu.memory_space<vmem>>, vector<64x128xf32>,
    return
  }
}

</mosaic_0001>

<llo_original>
// kernel: tpu_custom_call.1
$region0: #{tpu_custom_call.1}
  #allocation0 [shape = 'u32[]', space=smem, size = 0x4, offset = 0x4, fixed_abs, tag = 'smem constant byte address 0x4 - core index']
  #allocation1 [shape = 'u32[144,128]{1,0:T(1,128)}', space=vmem, size = 0x12000, scoped, tag = 'internal scratch']
  #allocation2 [shape = 'f32[64,32]{1,0:T(8,128)}', space=vmem, size = 0x8000, scoped, tag = 'scratch operand']
  %s0 = inlined_call_operand.vmem [shape: f32[64,32], index: 0, kind: input, shape index: {}]
  %s1 = inlined_call_operand.vmem [shape: f32[32,128], index: 1, kind: input, shape index: {}]
  %s2 = inlined_call_operand.vmem [shape: f32[32,128], index: 2, kind: input, shape index: {}]
  %s3 = inlined_call_operand.vmem [shape: f32[1,128], index: 3, kind: input, shape index: {}]
  %s4 = inlined_call_operand.vmem [shape: f32[32,128], index: 4, kind: input, shape index: {}]
  %s5 = inlined_call_operand.vmem [shape: f32[1,128], index: 5, kind: input, shape index: {}]
  %s6 = inlined_call_operand.hbm [shape: f32[64,128], index: 6, kind: output, shape index: {}]
  %s7 = sld [smem:[#allocation0]]
  $region34: #{tpu_custom_call.1} parent=0
    _
  %s9 = ssub.s32 1, %s7
  %s10 = scalar_select 0, %s9, %s7
  $region1: #{tpu_custom_call.1} parent=0
    #allocation3 [shape = 'u8[32768]{0}', space=vmem, size = 0x8000, scoped, tag = 'output window, operand 0, single buffered']
    #allocation4 [shape = 's32[1]{0}', space=sflag, size = 0x4, scoped, tag = 'scoped memory for tpu_custom_call.1']
    %11 = vsyncpa [#allocation4], 0
    // Predicated region
    $region2: #{tpu_custom_call.1} parent=1 // pred_check
      _
    $region3: #{tpu_custom_call.1} parent=1 // pred_check_branch
      %13 = sbr.rel (0) target = $region5
    $region4: #{tpu_custom_call.1} parent=1 // pred_region
      _
    $region5: #{tpu_custom_call.1} parent=1 // pred_fallthru
      _
    // Predicated region
    $region6: #{tpu_custom_call.1} parent=1 // pred_check
      _
    $region7: #{tpu_custom_call.1} parent=1 // pred_check_branch
      %15 = sbr.rel (0) target = $region9
    $region8: #{tpu_custom_call.1} parent=1 // pred_region
      _
    $region9: #{tpu_custom_call.1} parent=1 // pred_fallthru
      _
    // Predicated region
    $region10: #{tpu_custom_call.1} parent=1 // pred_check
      _
    $region11: #{tpu_custom_call.1} parent=1 // pred_check_branch
      %17 = sbr.rel (0) target = $region13
    $region12: #{tpu_custom_call.1} parent=1 // pred_region
      _
    $region13: #{tpu_custom_call.1} parent=1 // pred_fallthru
      _
    // Predicated region
    $region14: #{tpu_custom_call.1} parent=1 // pred_check
      _
    $region15: #{tpu_custom_call.1} parent=1 // pred_check_branch
      %19 = sbr.rel (0) target = $region17
    $region16: #{tpu_custom_call.1} parent=1 // pred_region
      _
    $region17: #{tpu_custom_call.1} parent=1 // pred_fallthru
      _
    // Predicated region
    $region18: #{tpu_custom_call.1} parent=1 // pred_check
      _
    $region19: #{tpu_custom_call.1} parent=1 // pred_check_branch
      %21 = sbr.rel (0) target = $region21
    $region20: #{tpu_custom_call.1} parent=1 // pred_region
      _
    $region21: #{tpu_custom_call.1} parent=1 // pred_fallthru
      _
    // Predicated region
    $region22: #{tpu_custom_call.1} parent=1 // pred_check
      _
    $region23: #{tpu_custom_call.1} parent=1 // pred_check_branch
      %23 = sbr.rel (0) target = $region25
    $region24: #{tpu_custom_call.1} parent=1 // pred_region
      _
    $region25: #{tpu_custom_call.1} parent=1 // pred_fallthru
      _
    %v24 = vld [vmem:[%s0] sm:$0xff]
    %v25 = vld [vmem:[%s0 + $0x8] sm:$0xff]
    %v26 = vld [vmem:[%s0 + $0x10] sm:$0xff]
    %v27 = vld [vmem:[%s0 + $0x18] sm:$0xff]
    %v28 = vld [vmem:[%s0 + $0x20] sm:$0xff]
    %v29 = vld [vmem:[%s0 + $0x28] sm:$0xff]
    %v30 = vld [vmem:[%s0 + $0x30] sm:$0xff]
    %v31 = vld [vmem:[%s0 + $0x38] sm:$0xff]
    %v32 = vld [vmem:[%s1] sm:$0xff]
    %v33 = vld [vmem:[%s1 + $0x8] sm:$0xff]
    %v34 = vld [vmem:[%s1 + $0x10] sm:$0xff]
    %v35 = vld [vmem:[%s1 + $0x18] sm:$0xff]
    %v36 = vld [vmem:[%s3] sm:$0x1]
    %v38 = vlaneseq
    %v39 = vshrl.u32 %v38, 7
    %v40 = vsub.s32 0, %v39
    %v41 = vrot.slane %v36, %v40
    %vm43 = vcmask 261120
    %v45 = vsel %vm43, %v24, 0
    %v48 = vsel %vm43, %v25, 0
    %v51 = vsel %vm43, %v26, 0
    %v54 = vsel %vm43, %v27, 0
    %v57 = vsel %vm43, %v28, 0
    %v60 = vsel %vm43, %v29, 0
    %v63 = vsel %vm43, %v30, 0
    %v66 = vsel %vm43, %v31, 0
    %68 = vmatprep.subr.mxu0 0.0
    %69 = vmatpush1.msra.mxu0 %v32
    %70 = vmatprep.subr.mxu0 0.0
    %71 = vmatpush1.msra.mxu0 %v33
    %72 = vmatprep.subr.mxu0 0.0
    %73 = vmatpush1.msra.mxu0 %v34
    %74 = vmatprep.subr.mxu0 0.0
    %75 = vmatpush1.msra.mxu0 %v35
    %76 = vmatprep.subr.mxu0 0.0
    %77 = vmatpush1.msra.mxu0 0.0
    %78 = vmatprep.subr.mxu0 0.0
    %79 = vmatpush1.msra.mxu0 0.0
    %80 = vmatprep.subr.mxu0 0.0
    %81 = vmatpush1.msra.mxu0 0.0
    %82 = vmatprep.subr.mxu0 0.0
    %83 = vmatpush1.msra.mxu0 0.0
    %84 = vmatprep.subr.mxu0 0.0
    %85 = vmatpush1.msra.mxu0 0.0
    %86 = vmatprep.subr.mxu0 0.0
    %87 = vmatpush1.msra.mxu0 0.0
    %88 = vmatprep.subr.mxu0 0.0
    %89 = vmatpush1.msra.mxu0 0.0
    %90 = vmatprep.subr.mxu0 0.0
    %91 = vmatpush1.msra.mxu0 0.0
    %92 = vmatprep.subr.mxu0 0.0
    %93 = vmatpush1.msra.mxu0 0.0
    %94 = vmatprep.subr.mxu0 0.0
    %95 = vmatpush1.msra.mxu0 0.0
    %96 = vmatprep.subr.mxu0 0.0
    %97 = vmatpush1.msra.mxu0 0.0
    %98 = vmatprep.subr.mxu0 0.0
    %99 = vmatpush1.msra.mxu0 0.0
    %100 = vmatprep.subr.mxu0 0.0
    %101 = vmatpush1.msra.mxu0 0.0
    %102 = vmatprep.subr.mxu0 0.0
    %103 = vmatpush1.msra.mxu0 0.0
    %104 = vmatprep.subr.mxu0 0.0
    %105 = vmatpush1.msra.mxu0 0.0
    %106 = vmatprep.subr.mxu0 0.0
    %107 = vmatpush1.msra.mxu0 0.0
    %108 = vmatprep.subr.mxu0 0.0
    %109 = vmatpush1.msra.mxu0 0.0
    %110 = vmatprep.subr.mxu0 0.0
    %111 = vmatpush1.msra.mxu0 0.0
    %112 = vmatprep.subr.mxu0 0.0
    %113 = vmatpush1.msra.mxu0 0.0
    %114 = vmatprep.subr.mxu0 0.0
    %115 = vmatpush1.msra.mxu0 0.0
    %116 = vmatprep.subr.mxu0 0.0
    %117 = vmatpush1.msra.mxu0 0.0
    %118 = vmatprep.subr.mxu0 0.0
    %119 = vmatpush1.msra.mxu0 0.0
    %120 = vmatprep.subr.mxu0 0.0
    %121 = vmatpush1.msra.mxu0 0.0
    %122 = vmatprep.subr.mxu0 0.0
    %123 = vmatpush1.msra.mxu0 0.0
    %124 = vmatprep.subr.mxu0 0.0
    %125 = vmatpush1.msra.mxu0 0.0
    %126 = vmatprep.subr.mxu0 0.0
    %127 = vmatpush1.msra.mxu0 0.0
    %128 = vmatprep.subr.mxu0 0.0
    %129 = vmatpush1.msra.mxu0 0.0
    %130 = vmatprep.subr.mxu0 0.0
    %131 = vmatpush1.msra.mxu0 0.0
    %132 = vmatprep.mubr.f32.mxu0 0.0
    %133 = vmatmul.mubr.f32.gmra.mrb[0].mxu0 %v45
    %v134 = vpop.f32.mrb[0].mxu0
    %v135 = vadd.f32 %v41, %v134
    %v136 = vpop.f32.mrb[0].mxu0
    %137 = vmatprep.mubr.f32.mxu0 0.0
    %138 = vmatmul.mubr.f32.gmra.mrb[0].mxu0 %v48
    %v139 = vpop.f32.mrb[0].mxu0
    %v140 = vadd.f32 %v41, %v139
    %v141 = vpop.f32.mrb[0].mxu0
    %142 = vmatprep.mubr.f32.mxu0 0.0
    %143 = vmatmul.mubr.f32.gmra.mrb[0].mxu0 %v51
    %v144 = vpop.f32.mrb[0].mxu0
    %v145 = vadd.f32 %v41, %v144
    %v146 = vpop.f32.mrb[0].mxu0
    %147 = vmatprep.mubr.f32.mxu0 0.0
    %148 = vmatmul.mubr.f32.gmra.mrb[0].mxu0 %v54
    %v149 = vpop.f32.mrb[0].mxu0
    %v150 = vadd.f32 %v41, %v149
    %v151 = vpop.f32.mrb[0].mxu0
    %152 = vmatprep.mubr.f32.mxu0 0.0
    %153 = vmatmul.mubr.f32.gmra.mrb[0].mxu0 %v57
    %v154 = vpop.f32.mrb[0].mxu0
    %v155 = vadd.f32 %v41, %v154
    %v156 = vpop.f32.mrb[0].mxu0
    %157 = vmatprep.mubr.f32.mxu0 0.0
    %158 = vmatmul.mubr.f32.gmra.mrb[0].mxu0 %v60
    %v159 = vpop.f32.mrb[0].mxu0
    %v160 = vadd.f32 %v41, %v159
    %v161 = vpop.f32.mrb[0].mxu0
    %162 = vmatprep.mubr.f32.mxu0 0.0
    %163 = vmatmul.mubr.f32.gmra.mrb[0].mxu0 %v63
    %v164 = vpop.f32.mrb[0].mxu0
    %v165 = vadd.f32 %v41, %v164
    %v166 = vpop.f32.mrb[0].mxu0
    %167 = vmatprep.mubr.f32.mxu0 0.0
    %168 = vmatmul.mubr.f32.gmra.mrb[0].mxu0 %v66
    %v169 = vpop.f32.mrb[0].mxu0
    %v170 = vadd.f32 %v41, %v169
    %v171 = vpop.f32.mrb[0].mxu0
    %172 = vdwg.mxu0
    %v173 = vld [vmem:[%s2] sm:$0xff]
    %v174 = vld [vmem:[%s2 + $0x8] sm:$0xff]
    %v175 = vld [vmem:[%s2 + $0x10] sm:$0xff]
    %v176 = vld [vmem:[%s2 + $0x18] sm:$0xff]
    %v177 = vxor.u32 %v135, 2147483648
    %v178 = vmul.f32 %v177, 1.442695
    %v179 = vpow.pop %v178
    %v180 = vadd.f32 %v179, 1.0
    %v181 = vrcp.pop %v180
    %v182 = vmul.f32 1.0, %v181
    %v183 = vtanh.pop %v135
    %v184 = vmul.f32 %v182, 0.0
    %186 = vrot.lane.b32.xlu0 %v183, 32
    %v187 = vpop.permute.xlu0 %186
    %v189 = vmul.f32 %v182, %v187
    %191 = vrot.lane.b32.xlu0 %v189, 32
    %v192 = vpop.permute.xlu0 %191
    %v194 = vadd.f32 %v184, %v192
    %v195 = vtanh.pop %v194
    %197 = vrot.lane.b32.xlu0 %v195, 32
    %v198 = vpop.permute.xlu0 %197
    %v200 = vmul.f32 %v182, %v198
    %202 = vrot.lane.b32.xlu0 %v200, 64
    %v203 = vpop.permute.xlu0 %202
    %205 = vst.msk [vmem:[#allocation2] sm:$0xff] %vm43, %v203
    %v206 = vsel %vm43, %v203, 0
    %208 = vmatprep.subr.mxu0 0.0
    %209 = vmatpush1.msra.mxu0 %v173
    %210 = vmatprep.subr.mxu0 0.0
    %211 = vmatpush1.msra.mxu0 %v174
    %212 = vmatprep.subr.mxu0 0.0
    %213 = vmatpush1.msra.mxu0 %v175
    %214 = vmatprep.subr.mxu0 0.0
    %215 = vmatpush1.msra.mxu0 %v176
    %216 = vmatprep.subr.mxu0 0.0
    %217 = vmatpush1.msra.mxu0 0.0
    %218 = vmatprep.subr.mxu0 0.0
    %219 = vmatpush1.msra.mxu0 0.0
    %220 = vmatprep.subr.mxu0 0.0
    %221 = vmatpush1.msra.mxu0 0.0
    %222 = vmatprep.subr.mxu0 0.0
    %223 = vmatpush1.msra.mxu0 0.0
    %224 = vmatprep.subr.mxu0 0.0
    %225 = vmatpush1.msra.mxu0 0.0
    %226 = vmatprep.subr.mxu0 0.0
    %227 = vmatpush1.msra.mxu0 0.0
    %228 = vmatprep.subr.mxu0 0.0
    %229 = vmatpush1.msra.mxu0 0.0
    %230 = vmatprep.subr.mxu0 0.0
    %231 = vmatpush1.msra.mxu0 0.0
    %232 = vmatprep.subr.mxu0 0.0
    %233 = vmatpush1.msra.mxu0 0.0
    %234 = vmatprep.subr.mxu0 0.0
    %235 = vmatpush1.msra.mxu0 0.0
    %236 = vmatprep.subr.mxu0 0.0
    %237 = vmatpush1.msra.mxu0 0.0
    %238 = vmatprep.subr.mxu0 0.0
    %239 = vmatpush1.msra.mxu0 0.0
    %240 = vmatprep.subr.mxu0 0.0
    %241 = vmatpush1.msra.mxu0 0.0
    %242 = vmatprep.subr.mxu0 0.0
    %243 = vmatpush1.msra.mxu0 0.0
    %244 = vmatprep.subr.mxu0 0.0
    %245 = vmatpush1.msra.mxu0 0.0
    %246 = vmatprep.subr.mxu0 0.0
    %247 = vmatpush1.msra.mxu0 0.0
    %248 = vmatprep.subr.mxu0 0.0
    %249 = vmatpush1.msra.mxu0 0.0
    %250 = vmatprep.subr.mxu0 0.0
    %251 = vmatpush1.msra.mxu0 0.0
    %252 = vmatprep.subr.mxu0 0.0
    %253 = vmatpush1.msra.mxu0 0.0
    %254 = vmatprep.subr.mxu0 0.0
    %255 = vmatpush1.msra.mxu0 0.0
    %256 = vmatprep.subr.mxu0 0.0
    %257 = vmatpush1.msra.mxu0 0.0
    %258 = vmatprep.subr.mxu0 0.0
    %259 = vmatpush1.msra.mxu0 0.0
    %260 = vmatprep.subr.mxu0 0.0
    %261 = vmatpush1.msra.mxu0 0.0
    %262 = vmatprep.subr.mxu0 0.0
    %263 = vmatpush1.msra.mxu0 0.0
    %264 = vmatprep.subr.mxu0 0.0
    %265 = vmatpush1.msra.mxu0 0.0
    %266 = vmatprep.subr.mxu0 0.0
    %267 = vmatpush1.msra.mxu0 0.0
    %268 = vmatprep.subr.mxu0 0.0
    %269 = vmatpush1.msra.mxu0 0.0
    %270 = vmatprep.subr.mxu0 0.0
    %271 = vmatpush1.msra.mxu0 0.0
    %272 = vmatprep.mubr.f32.mxu0 0.0
    %273 = vmatmul.mubr.f32.gmra.mrb[0].mxu0 %v206
    %v274 = vpop.f32.mrb[0].mxu0
    %v275 = vadd.f32 0.0, %v274
    %v276 = vpop.f32.mrb[0].mxu0
    %277 = vdwg.mxu0
    %v278 = vadd.f32 %v140, %v275
    %v279 = vxor.u32 %v278, 2147483648
    %v280 = vmul.f32 %v279, 1.442695
    %v281 = vpow.pop %v280
    %v282 = vadd.f32 %v281, 1.0
    %v283 = vrcp.pop %v282
    %v284 = vmul.f32 1.0, %v283
    %v285 = vtanh.pop %v278
    %v286 = vmul.f32 %v284, %v194
    %288 = vrot.lane.b32.xlu0 %v285, 32
    %v289 = vpop.permute.xlu0 %288
    %v291 = vmul.f32 %v284, %v289
    %293 = vrot.lane.b32.xlu0 %v291, 32
    %v294 = vpop.permute.xlu0 %293
    %v296 = vadd.f32 %v286, %v294
    %v297 = vtanh.pop %v296
    %299 = vrot.lane.b32.xlu0 %v297, 32
    %v300 = vpop.permute.xlu0 %299
    %v302 = vmul.f32 %v284, %v300
    %304 = vrot.lane.b32.xlu0 %v302, 64
    %v305 = vpop.permute.xlu0 %304
    %307 = vst.msk [vmem:[#allocation2 + $0x8] sm:$0xff] %vm43, %v305
    %v308 = vsel %vm43, %v305, 0
    %310 = vmatprep.subr.mxu0 0.0
    %311 = vmatpush1.msra.mxu0 %v173
    %312 = vmatprep.subr.mxu0 0.0
    %313 = vmatpush1.msra.mxu0 %v174
    %314 = vmatprep.subr.mxu0 0.0
    %315 = vmatpush1.msra.mxu0 %v175
    %316 = vmatprep.subr.mxu0 0.0
    %317 = vmatpush1.msra.mxu0 %v176
    %318 = vmatprep.subr.mxu0 0.0
    %319 = vmatpush1.msra.mxu0 0.0
    %320 = vmatprep.subr.mxu0 0.0
    %321 = vmatpush1.msra.mxu0 0.0
    %322 = vmatprep.subr.mxu0 0.0
    %323 = vmatpush1.msra.mxu0 0.0
    %324 = vmatprep.subr.mxu0 0.0
    %325 = vmatpush1.msra.mxu0 0.0
    %326 = vmatprep.subr.mxu0 0.0
    %327 = vmatpush1.msra.mxu0 0.0
    %328 = vmatprep.subr.mxu0 0.0
    %329 = vmatpush1.msra.mxu0 0.0
    %330 = vmatprep.subr.mxu0 0.0
    %331 = vmatpush1.msra.mxu0 0.0
    %332 = vmatprep.subr.mxu0 0.0
    %333 = vmatpush1.msra.mxu0 0.0
    %334 = vmatprep.subr.mxu0 0.0
    %335 = vmatpush1.msra.mxu0 0.0
    %336 = vmatprep.subr.mxu0 0.0
    %337 = vmatpush1.msra.mxu0 0.0
    %338 = vmatprep.subr.mxu0 0.0
    %339 = vmatpush1.msra.mxu0 0.0
    %340 = vmatprep.subr.mxu0 0.0
    %341 = vmatpush1.msra.mxu0 0.0
    %342 = vmatprep.subr.mxu0 0.0
    %343 = vmatpush1.msra.mxu0 0.0
    %344 = vmatprep.subr.mxu0 0.0
    %345 = vmatpush1.msra.mxu0 0.0
    %346 = vmatprep.subr.mxu0 0.0
    %347 = vmatpush1.msra.mxu0 0.0
    %348 = vmatprep.subr.mxu0 0.0
    %349 = vmatpush1.msra.mxu0 0.0
    %350 = vmatprep.subr.mxu0 0.0
    %351 = vmatpush1.msra.mxu0 0.0
    %352 = vmatprep.subr.mxu0 0.0
    %353 = vmatpush1.msra.mxu0 0.0
    %354 = vmatprep.subr.mxu0 0.0
    %355 = vmatpush1.msra.mxu0 0.0
    %356 = vmatprep.subr.mxu0 0.0
    %357 = vmatpush1.msra.mxu0 0.0
    %358 = vmatprep.subr.mxu0 0.0
    %359 = vmatpush1.msra.mxu0 0.0
    %360 = vmatprep.subr.mxu0 0.0
    %361 = vmatpush1.msra.mxu0 0.0
    %362 = vmatprep.subr.mxu0 0.0
    %363 = vmatpush1.msra.mxu0 0.0
    %364 = vmatprep.subr.mxu0 0.0
    %365 = vmatpush1.msra.mxu0 0.0
    %366 = vmatprep.subr.mxu0 0.0
    %367 = vmatpush1.msra.mxu0 0.0
    %368 = vmatprep.subr.mxu0 0.0
    %369 = vmatpush1.msra.mxu0 0.0
    %370 = vmatprep.subr.mxu0 0.0
    %371 = vmatpush1.msra.mxu0 0.0
    %372 = vmatprep.subr.mxu0 0.0
    %373 = vmatpush1.msra.mxu0 0.0
    %374 = vmatprep.mubr.f32.mxu0 0.0
    %375 = vmatmul.mubr.f32.gmra.mrb[0].mxu0 %v308
    %v376 = vpop.f32.mrb[0].mxu0
    %v377 = vadd.f32 0.0, %v376
    %v378 = vpop.f32.mrb[0].mxu0
    %379 = vdwg.mxu0
    %v380 = vadd.f32 %v145, %v377
    %v381 = vxor.u32 %v380, 2147483648
    %v382 = vmul.f32 %v381, 1.442695
    %v383 = vpow.pop %v382
    %v384 = vadd.f32 %v383, 1.0
    %v385 = vrcp.pop %v384
    %v386 = vmul.f32 1.0, %v385
    %v387 = vtanh.pop %v380
    %v388 = vmul.f32 %v386, %v296
    %390 = vrot.lane.b32.xlu0 %v387, 32
    %v391 = vpop.permute.xlu0 %390
    %v393 = vmul.f32 %v386, %v391
    %395 = vrot.lane.b32.xlu0 %v393, 32
    %v396 = vpop.permute.xlu0 %395
    %v398 = vadd.f32 %v388, %v396
    %v399 = vtanh.pop %v398
    %401 = vrot.lane.b32.xlu0 %v399, 32
    %v402 = vpop.permute.xlu0 %401
    %v404 = vmul.f32 %v386, %v402
    %406 = vrot.lane.b32.xlu0 %v404, 64
    %v407 = vpop.permute.xlu0 %406
    %409 = vst.msk [vmem:[#allocation2 + $0x10] sm:$0xff] %vm43, %v407
    %v410 = vsel %vm43, %v407, 0
    %412 = vmatprep.subr.mxu0 0.0
    %413 = vmatpush1.msra.mxu0 %v173
    %414 = vmatprep.subr.mxu0 0.0
    %415 = vmatpush1.msra.mxu0 %v174
    %416 = vmatprep.subr.mxu0 0.0
    %417 = vmatpush1.msra.mxu0 %v175
    %418 = vmatprep.subr.mxu0 0.0
    %419 = vmatpush1.msra.mxu0 %v176
    %420 = vmatprep.subr.mxu0 0.0
    %421 = vmatpush1.msra.mxu0 0.0
    %422 = vmatprep.subr.mxu0 0.0
    %423 = vmatpush1.msra.mxu0 0.0
    %424 = vmatprep.subr.mxu0 0.0
    %425 = vmatpush1.msra.mxu0 0.0
    %426 = vmatprep.subr.mxu0 0.0
    %427 = vmatpush1.msra.mxu0 0.0
    %428 = vmatprep.subr.mxu0 0.0
    %429 = vmatpush1.msra.mxu0 0.0
    %430 = vmatprep.subr.mxu0 0.0
    %431 = vmatpush1.msra.mxu0 0.0
    %432 = vmatprep.subr.mxu0 0.0
    %433 = vmatpush1.msra.mxu0 0.0
    %434 = vmatprep.subr.mxu0 0.0
    %435 = vmatpush1.msra.mxu0 0.0
    %436 = vmatprep.subr.mxu0 0.0
    %437 = vmatpush1.msra.mxu0 0.0
    %438 = vmatprep.subr.mxu0 0.0
    %439 = vmatpush1.msra.mxu0 0.0
    %440 = vmatprep.subr.mxu0 0.0
    %441 = vmatpush1.msra.mxu0 0.0
    %442 = vmatprep.subr.mxu0 0.0
    %443 = vmatpush1.msra.mxu0 0.0
    %444 = vmatprep.subr.mxu0 0.0
    %445 = vmatpush1.msra.mxu0 0.0
    %446 = vmatprep.subr.mxu0 0.0
    %447 = vmatpush1.msra.mxu0 0.0
    %448 = vmatprep.subr.mxu0 0.0
    %449 = vmatpush1.msra.mxu0 0.0
    %450 = vmatprep.subr.mxu0 0.0
    %451 = vmatpush1.msra.mxu0 0.0
    %452 = vmatprep.subr.mxu0 0.0
    %453 = vmatpush1.msra.mxu0 0.0
    %454 = vmatprep.subr.mxu0 0.0
    %455 = vmatpush1.msra.mxu0 0.0
    %456 = vmatprep.subr.mxu0 0.0
    %457 = vmatpush1.msra.mxu0 0.0
    %458 = vmatprep.subr.mxu0 0.0
    %459 = vmatpush1.msra.mxu0 0.0
    %460 = vmatprep.subr.mxu0 0.0
    %461 = vmatpush1.msra.mxu0 0.0
    %462 = vmatprep.subr.mxu0 0.0
    %463 = vmatpush1.msra.mxu0 0.0
    %464 = vmatprep.subr.mxu0 0.0
    %465 = vmatpush1.msra.mxu0 0.0
    %466 = vmatprep.subr.mxu0 0.0
    %467 = vmatpush1.msra.mxu0 0.0
    %468 = vmatprep.subr.mxu0 0.0
    %469 = vmatpush1.msra.mxu0 0.0
    %470 = vmatprep.subr.mxu0 0.0
    %471 = vmatpush1.msra.mxu0 0.0
    %472 = vmatprep.subr.mxu0 0.0
    %473 = vmatpush1.msra.mxu0 0.0
    %474 = vmatprep.subr.mxu0 0.0
    %475 = vmatpush1.msra.mxu0 0.0
    %476 = vmatprep.mubr.f32.mxu0 0.0
    %477 = vmatmul.mubr.f32.gmra.mrb[0].mxu0 %v410
    %v478 = vpop.f32.mrb[0].mxu0
    %v479 = vadd.f32 0.0, %v478
    %v480 = vpop.f32.mrb[0].mxu0
    %481 = vdwg.mxu0
    %v482 = vadd.f32 %v150, %v479
    %v483 = vxor.u32 %v482, 2147483648
    %v484 = vmul.f32 %v483, 1.442695
    %v485 = vpow.pop %v484
    %v486 = vadd.f32 %v485, 1.0
    %v487 = vrcp.pop %v486
    %v488 = vmul.f32 1.0, %v487
    %v489 = vtanh.pop %v482
    %v490 = vmul.f32 %v488, %v398
    %492 = vrot.lane.b32.xlu0 %v489, 32
    %v493 = vpop.permute.xlu0 %492
    %v495 = vmul.f32 %v488, %v493
    %497 = vrot.lane.b32.xlu0 %v495, 32
    %v498 = vpop.permute.xlu0 %497
    %v500 = vadd.f32 %v490, %v498
    %v501 = vtanh.pop %v500
    %503 = vrot.lane.b32.xlu0 %v501, 32
    %v504 = vpop.permute.xlu0 %503
    %v506 = vmul.f32 %v488, %v504
    %508 = vrot.lane.b32.xlu0 %v506, 64
    %v509 = vpop.permute.xlu0 %508
    %511 = vst.msk [vmem:[#allocation2 + $0x18] sm:$0xff] %vm43, %v509
    %v512 = vsel %vm43, %v509, 0
    %514 = vmatprep.subr.mxu0 0.0
    %515 = vmatpush1.msra.mxu0 %v173
    %516 = vmatprep.subr.mxu0 0.0
    %517 = vmatpush1.msra.mxu0 %v174
    %518 = vmatprep.subr.mxu0 0.0
    %519 = vmatpush1.msra.mxu0 %v175
    %520 = vmatprep.subr.mxu0 0.0
    %521 = vmatpush1.msra.mxu0 %v176
    %522 = vmatprep.subr.mxu0 0.0
    %523 = vmatpush1.msra.mxu0 0.0
    %524 = vmatprep.subr.mxu0 0.0
    %525 = vmatpush1.msra.mxu0 0.0
    %526 = vmatprep.subr.mxu0 0.0
    %527 = vmatpush1.msra.mxu0 0.0
    %528 = vmatprep.subr.mxu0 0.0
    %529 = vmatpush1.msra.mxu0 0.0
    %530 = vmatprep.subr.mxu0 0.0
    %531 = vmatpush1.msra.mxu0 0.0
    %532 = vmatprep.subr.mxu0 0.0
    %533 = vmatpush1.msra.mxu0 0.0
    %534 = vmatprep.subr.mxu0 0.0
    %535 = vmatpush1.msra.mxu0 0.0
    %536 = vmatprep.subr.mxu0 0.0
    %537 = vmatpush1.msra.mxu0 0.0
    %538 = vmatprep.subr.mxu0 0.0
    %539 = vmatpush1.msra.mxu0 0.0
    %540 = vmatprep.subr.mxu0 0.0
    %541 = vmatpush1.msra.mxu0 0.0
    %542 = vmatprep.subr.mxu0 0.0
    %543 = vmatpush1.msra.mxu0 0.0
    %544 = vmatprep.subr.mxu0 0.0
    %545 = vmatpush1.msra.mxu0 0.0
    %546 = vmatprep.subr.mxu0 0.0
    %547 = vmatpush1.msra.mxu0 0.0
    %548 = vmatprep.subr.mxu0 0.0
    %549 = vmatpush1.msra.mxu0 0.0
    %550 = vmatprep.subr.mxu0 0.0
    %551 = vmatpush1.msra.mxu0 0.0
    %552 = vmatprep.subr.mxu0 0.0
    %553 = vmatpush1.msra.mxu0 0.0
    %554 = vmatprep.subr.mxu0 0.0
    %555 = vmatpush1.msra.mxu0 0.0
    %556 = vmatprep.subr.mxu0 0.0
    %557 = vmatpush1.msra.mxu0 0.0
    %558 = vmatprep.subr.mxu0 0.0
    %559 = vmatpush1.msra.mxu0 0.0
    %560 = vmatprep.subr.mxu0 0.0
    %561 = vmatpush1.msra.mxu0 0.0
    %562 = vmatprep.subr.mxu0 0.0
    %563 = vmatpush1.msra.mxu0 0.0
    %564 = vmatprep.subr.mxu0 0.0
    %565 = vmatpush1.msra.mxu0 0.0
    %566 = vmatprep.subr.mxu0 0.0
    %567 = vmatpush1.msra.mxu0 0.0
    %568 = vmatprep.subr.mxu0 0.0
    %569 = vmatpush1.msra.mxu0 0.0
    %570 = vmatprep.subr.mxu0 0.0
    %571 = vmatpush1.msra.mxu0 0.0
    %572 = vmatprep.subr.mxu0 0.0
    %573 = vmatpush1.msra.mxu0 0.0
    %574 = vmatprep.subr.mxu0 0.0
    %575 = vmatpush1.msra.mxu0 0.0
    %576 = vmatprep.subr.mxu0 0.0
    %577 = vmatpush1.msra.mxu0 0.0
    %578 = vmatprep.mubr.f32.mxu0 0.0
    %579 = vmatmul.mubr.f32.gmra.mrb[0].mxu0 %v512
    %v580 = vpop.f32.mrb[0].mxu0
    %v581 = vadd.f32 0.0, %v580
    %v582 = vpop.f32.mrb[0].mxu0
    %583 = vdwg.mxu0
    %v584 = vadd.f32 %v155, %v581
    %v585 = vxor.u32 %v584, 2147483648
    %v586 = vmul.f32 %v585, 1.442695
    %v587 = vpow.pop %v586
    %v588 = vadd.f32 %v587, 1.0
    %v589 = vrcp.pop %v588
    %v590 = vmul.f32 1.0, %v589
    %v591 = vtanh.pop %v584
    %v592 = vmul.f32 %v590, %v500
    %594 = vrot.lane.b32.xlu0 %v591, 32
    %v595 = vpop.permute.xlu0 %594
    %v597 = vmul.f32 %v590, %v595
    %599 = vrot.lane.b32.xlu0 %v597, 32
    %v600 = vpop.permute.xlu0 %599
    %v602 = vadd.f32 %v592, %v600
    %v603 = vtanh.pop %v602
    %605 = vrot.lane.b32.xlu0 %v603, 32
    %v606 = vpop.permute.xlu0 %605
    %v608 = vmul.f32 %v590, %v606
    %610 = vrot.lane.b32.xlu0 %v608, 64
    %v611 = vpop.permute.xlu0 %610
    %613 = vst.msk [vmem:[#allocation2 + $0x20] sm:$0xff] %vm43, %v611
    %v614 = vsel %vm43, %v611, 0
    %616 = vmatprep.subr.mxu0 0.0
    %617 = vmatpush1.msra.mxu0 %v173
    %618 = vmatprep.subr.mxu0 0.0
    %619 = vmatpush1.msra.mxu0 %v174
    %620 = vmatprep.subr.mxu0 0.0
    %621 = vmatpush1.msra.mxu0 %v175
    %622 = vmatprep.subr.mxu0 0.0
    %623 = vmatpush1.msra.mxu0 %v176
    %624 = vmatprep.subr.mxu0 0.0
    %625 = vmatpush1.msra.mxu0 0.0
    %626 = vmatprep.subr.mxu0 0.0
    %627 = vmatpush1.msra.mxu0 0.0
    %628 = vmatprep.subr.mxu0 0.0
    %629 = vmatpush1.msra.mxu0 0.0
    %630 = vmatprep.subr.mxu0 0.0
    %631 = vmatpush1.msra.mxu0 0.0
    %632 = vmatprep.subr.mxu0 0.0
    %633 = vmatpush1.msra.mxu0 0.0
    %634 = vmatprep.subr.mxu0 0.0
    %635 = vmatpush1.msra.mxu0 0.0
    %636 = vmatprep.subr.mxu0 0.0
    %637 = vmatpush1.msra.mxu0 0.0
    %638 = vmatprep.subr.mxu0 0.0
    %639 = vmatpush1.msra.mxu0 0.0
    %640 = vmatprep.subr.mxu0 0.0
    %641 = vmatpush1.msra.mxu0 0.0
    %642 = vmatprep.subr.mxu0 0.0
    %643 = vmatpush1.msra.mxu0 0.0
    %644 = vmatprep.subr.mxu0 0.0
    %645 = vmatpush1.msra.mxu0 0.0
    %646 = vmatprep.subr.mxu0 0.0
    %647 = vmatpush1.msra.mxu0 0.0
    %648 = vmatprep.subr.mxu0 0.0
    %649 = vmatpush1.msra.mxu0 0.0
    %650 = vmatprep.subr.mxu0 0.0
    %651 = vmatpush1.msra.mxu0 0.0
    %652 = vmatprep.subr.mxu0 0.0
    %653 = vmatpush1.msra.mxu0 0.0
    %654 = vmatprep.subr.mxu0 0.0
    %655 = vmatpush1.msra.mxu0 0.0
    %656 = vmatprep.subr.mxu0 0.0
    %657 = vmatpush1.msra.mxu0 0.0
    %658 = vmatprep.subr.mxu0 0.0
    %659 = vmatpush1.msra.mxu0 0.0
    %660 = vmatprep.subr.mxu0 0.0
    %661 = vmatpush1.msra.mxu0 0.0
    %662 = vmatprep.subr.mxu0 0.0
    %663 = vmatpush1.msra.mxu0 0.0
    %664 = vmatprep.subr.mxu0 0.0
    %665 = vmatpush1.msra.mxu0 0.0
    %666 = vmatprep.subr.mxu0 0.0
    %667 = vmatpush1.msra.mxu0 0.0
    %668 = vmatprep.subr.mxu0 0.0
    %669 = vmatpush1.msra.mxu0 0.0
    %670 = vmatprep.subr.mxu0 0.0
    %671 = vmatpush1.msra.mxu0 0.0
    %672 = vmatprep.subr.mxu0 0.0
    %673 = vmatpush1.msra.mxu0 0.0
    %674 = vmatprep.subr.mxu0 0.0
    %675 = vmatpush1.msra.mxu0 0.0
    %676 = vmatprep.subr.mxu0 0.0
    %677 = vmatpush1.msra.mxu0 0.0
    %678 = vmatprep.subr.mxu0 0.0
    %679 = vmatpush1.msra.mxu0 0.0
    %680 = vmatprep.mubr.f32.mxu0 0.0
    %681 = vmatmul.mubr.f32.gmra.mrb[0].mxu0 %v614
    %v682 = vpop.f32.mrb[0].mxu0
    %v683 = vadd.f32 0.0, %v682
    %v684 = vpop.f32.mrb[0].mxu0
    %685 = vdwg.mxu0
    %v686 = vadd.f32 %v160, %v683
    %v687 = vxor.u32 %v686, 2147483648
    %v688 = vmul.f32 %v687, 1.442695
    %v689 = vpow.pop %v688
    %v690 = vadd.f32 %v689, 1.0
    %v691 = vrcp.pop %v690
    %v692 = vmul.f32 1.0, %v691
    %v693 = vtanh.pop %v686
    %v694 = vmul.f32 %v692, %v602
    %696 = vrot.lane.b32.xlu0 %v693, 32
    %v697 = vpop.permute.xlu0 %696
    %v699 = vmul.f32 %v692, %v697
    %701 = vrot.lane.b32.xlu0 %v699, 32
    %v702 = vpop.permute.xlu0 %701
    %v704 = vadd.f32 %v694, %v702
    %v705 = vtanh.pop %v704
    %707 = vrot.lane.b32.xlu0 %v705, 32
    %v708 = vpop.permute.xlu0 %707
    %v710 = vmul.f32 %v692, %v708
    %712 = vrot.lane.b32.xlu0 %v710, 64
    %v713 = vpop.permute.xlu0 %712
    %715 = vst.msk [vmem:[#allocation2 + $0x28] sm:$0xff] %vm43, %v713
    %v716 = vsel %vm43, %v713, 0
    %718 = vmatprep.subr.mxu0 0.0
    %719 = vmatpush1.msra.mxu0 %v173
    %720 = vmatprep.subr.mxu0 0.0
    %721 = vmatpush1.msra.mxu0 %v174
    %722 = vmatprep.subr.mxu0 0.0
    %723 = vmatpush1.msra.mxu0 %v175
    %724 = vmatprep.subr.mxu0 0.0
    %725 = vmatpush1.msra.mxu0 %v176
    %726 = vmatprep.subr.mxu0 0.0
    %727 = vmatpush1.msra.mxu0 0.0
    %728 = vmatprep.subr.mxu0 0.0
    %729 = vmatpush1.msra.mxu0 0.0
    %730 = vmatprep.subr.mxu0 0.0
    %731 = vmatpush1.msra.mxu0 0.0
    %732 = vmatprep.subr.mxu0 0.0
    %733 = vmatpush1.msra.mxu0 0.0
    %734 = vmatprep.subr.mxu0 0.0
    %735 = vmatpush1.msra.mxu0 0.0
    %736 = vmatprep.subr.mxu0 0.0
    %737 = vmatpush1.msra.mxu0 0.0
    %738 = vmatprep.subr.mxu0 0.0
    %739 = vmatpush1.msra.mxu0 0.0
    %740 = vmatprep.subr.mxu0 0.0
    %741 = vmatpush1.msra.mxu0 0.0
    %742 = vmatprep.subr.mxu0 0.0
    %743 = vmatpush1.msra.mxu0 0.0
    %744 = vmatprep.subr.mxu0 0.0
    %745 = vmatpush1.msra.mxu0 0.0
    %746 = vmatprep.subr.mxu0 0.0
    %747 = vmatpush1.msra.mxu0 0.0
    %748 = vmatprep.subr.mxu0 0.0
    %749 = vmatpush1.msra.mxu0 0.0
    %750 = vmatprep.subr.mxu0 0.0
    %751 = vmatpush1.msra.mxu0 0.0
    %752 = vmatprep.subr.mxu0 0.0
    %753 = vmatpush1.msra.mxu0 0.0
    %754 = vmatprep.subr.mxu0 0.0
    %755 = vmatpush1.msra.mxu0 0.0
    %756 = vmatprep.subr.mxu0 0.0
    %757 = vmatpush1.msra.mxu0 0.0
    %758 = vmatprep.subr.mxu0 0.0
    %759 = vmatpush1.msra.mxu0 0.0
    %760 = vmatprep.subr.mxu0 0.0
    %761 = vmatpush1.msra.mxu0 0.0
    %762 = vmatprep.subr.mxu0 0.0
    %763 = vmatpush1.msra.mxu0 0.0
    %764 = vmatprep.subr.mxu0 0.0
    %765 = vmatpush1.msra.mxu0 0.0
    %766 = vmatprep.subr.mxu0 0.0
    %767 = vmatpush1.msra.mxu0 0.0
    %768 = vmatprep.subr.mxu0 0.0
    %769 = vmatpush1.msra.mxu0 0.0
    %770 = vmatprep.subr.mxu0 0.0
    %771 = vmatpush1.msra.mxu0 0.0
    %772 = vmatprep.subr.mxu0 0.0
    %773 = vmatpush1.msra.mxu0 0.0
    %774 = vmatprep.subr.mxu0 0.0
    %775 = vmatpush1.msra.mxu0 0.0
    %776 = vmatprep.subr.mxu0 0.0
    %777 = vmatpush1.msra.mxu0 0.0
    %778 = vmatprep.subr.mxu0 0.0
    %779 = vmatpush1.msra.mxu0 0.0
    %780 = vmatprep.subr.mxu0 0.0
    %781 = vmatpush1.msra.mxu0 0.0
    %782 = vmatprep.mubr.f32.mxu0 0.0
    %783 = vmatmul.mubr.f32.gmra.mrb[0].mxu0 %v716
    %v784 = vpop.f32.mrb[0].mxu0
    %v785 = vadd.f32 0.0, %v784
    %v786 = vpop.f32.mrb[0].mxu0
    %787 = vdwg.mxu0
    %v788 = vadd.f32 %v165, %v785
    %v789 = vxor.u32 %v788, 2147483648
    %v790 = vmul.f32 %v789, 1.442695
    %v791 = vpow.pop %v790
    %v792 = vadd.f32 %v791, 1.0
    %v793 = vrcp.pop %v792
    %v794 = vmul.f32 1.0, %v793
    %v795 = vtanh.pop %v788
    %v796 = vmul.f32 %v794, %v704
    %798 = vrot.lane.b32.xlu0 %v795, 32
    %v799 = vpop.permute.xlu0 %798
    %v801 = vmul.f32 %v794, %v799
    %803 = vrot.lane.b32.xlu0 %v801, 32
    %v804 = vpop.permute.xlu0 %803
    %v806 = vadd.f32 %v796, %v804
    %v807 = vtanh.pop %v806
    %809 = vrot.lane.b32.xlu0 %v807, 32
    %v810 = vpop.permute.xlu0 %809
    %v812 = vmul.f32 %v794, %v810
    %814 = vrot.lane.b32.xlu0 %v812, 64
    %v815 = vpop.permute.xlu0 %814
    %817 = vst.msk [vmem:[#allocation2 + $0x30] sm:$0xff] %vm43, %v815
    %v818 = vsel %vm43, %v815, 0
    %820 = vmatprep.subr.mxu0 0.0
    %821 = vmatpush1.msra.mxu0 %v173
    %822 = vmatprep.subr.mxu0 0.0
    %823 = vmatpush1.msra.mxu0 %v174
    %824 = vmatprep.subr.mxu0 0.0
    %825 = vmatpush1.msra.mxu0 %v175
    %826 = vmatprep.subr.mxu0 0.0
    %827 = vmatpush1.msra.mxu0 %v176
    %828 = vmatprep.subr.mxu0 0.0
    %829 = vmatpush1.msra.mxu0 0.0
    %830 = vmatprep.subr.mxu0 0.0
    %831 = vmatpush1.msra.mxu0 0.0
    %832 = vmatprep.subr.mxu0 0.0
    %833 = vmatpush1.msra.mxu0 0.0
    %834 = vmatprep.subr.mxu0 0.0
    %835 = vmatpush1.msra.mxu0 0.0
    %836 = vmatprep.subr.mxu0 0.0
    %837 = vmatpush1.msra.mxu0 0.0
    %838 = vmatprep.subr.mxu0 0.0
    %839 = vmatpush1.msra.mxu0 0.0
    %840 = vmatprep.subr.mxu0 0.0
    %841 = vmatpush1.msra.mxu0 0.0
    %842 = vmatprep.subr.mxu0 0.0
    %843 = vmatpush1.msra.mxu0 0.0
    %844 = vmatprep.subr.mxu0 0.0
    %845 = vmatpush1.msra.mxu0 0.0
    %846 = vmatprep.subr.mxu0 0.0
    %847 = vmatpush1.msra.mxu0 0.0
    %848 = vmatprep.subr.mxu0 0.0
    %849 = vmatpush1.msra.mxu0 0.0
    %850 = vmatprep.subr.mxu0 0.0
    %851 = vmatpush1.msra.mxu0 0.0
    %852 = vmatprep.subr.mxu0 0.0
    %853 = vmatpush1.msra.mxu0 0.0
    %854 = vmatprep.subr.mxu0 0.0
    %855 = vmatpush1.msra.mxu0 0.0
    %856 = vmatprep.subr.mxu0 0.0
    %857 = vmatpush1.msra.mxu0 0.0
    %858 = vmatprep.subr.mxu0 0.0
    %859 = vmatpush1.msra.mxu0 0.0
    %860 = vmatprep.subr.mxu0 0.0
    %861 = vmatpush1.msra.mxu0 0.0
    %862 = vmatprep.subr.mxu0 0.0
    %863 = vmatpush1.msra.mxu0 0.0
    %864 = vmatprep.subr.mxu0 0.0
    %865 = vmatpush1.msra.mxu0 0.0
    %866 = vmatprep.subr.mxu0 0.0
    %867 = vmatpush1.msra.mxu0 0.0
    %868 = vmatprep.subr.mxu0 0.0
    %869 = vmatpush1.msra.mxu0 0.0
    %870 = vmatprep.subr.mxu0 0.0
    %871 = vmatpush1.msra.mxu0 0.0
    %872 = vmatprep.subr.mxu0 0.0
    %873 = vmatpush1.msra.mxu0 0.0
    %874 = vmatprep.subr.mxu0 0.0
    %875 = vmatpush1.msra.mxu0 0.0
    %876 = vmatprep.subr.mxu0 0.0
    %877 = vmatpush1.msra.mxu0 0.0
    %878 = vmatprep.subr.mxu0 0.0
    %879 = vmatpush1.msra.mxu0 0.0
    %880 = vmatprep.subr.mxu0 0.0
    %881 = vmatpush1.msra.mxu0 0.0
    %882 = vmatprep.subr.mxu0 0.0
    %883 = vmatpush1.msra.mxu0 0.0
    %884 = vmatprep.mubr.f32.mxu0 0.0
    %885 = vmatmul.mubr.f32.gmra.mrb[0].mxu0 %v818
    %v886 = vpop.f32.mrb[0].mxu0
    %v887 = vadd.f32 0.0, %v886
    %v888 = vpop.f32.mrb[0].mxu0
    %889 = vdwg.mxu0
    %v890 = vadd.f32 %v170, %v887
    %v891 = vxor.u32 %v890, 2147483648
    %v892 = vmul.f32 %v891, 1.442695
    %v893 = vpow.pop %v892
    %v894 = vadd.f32 %v893, 1.0
    %v895 = vrcp.pop %v894
    %v896 = vmul.f32 1.0, %v895
    %v897 = vtanh.pop %v890
    %v898 = vmul.f32 %v896, %v806
    %900 = vrot.lane.b32.xlu0 %v897, 32
    %v901 = vpop.permute.xlu0 %900
    %v903 = vmul.f32 %v896, %v901
    %905 = vrot.lane.b32.xlu0 %v903, 32
    %v906 = vpop.permute.xlu0 %905
    %v908 = vadd.f32 %v898, %v906
    %v909 = vtanh.pop %v908
    %911 = vrot.lane.b32.xlu0 %v909, 32
    %v912 = vpop.permute.xlu0 %911
    %v914 = vmul.f32 %v896, %v912
    %916 = vrot.lane.b32.xlu0 %v914, 64
    %v917 = vpop.permute.xlu0 %916
    %919 = vst.msk [vmem:[#allocation2 + $0x38] sm:$0xff] %vm43, %v917
    %v920 = vld [vmem:[#allocation2] sm:$0xff]
    %v921 = vld [vmem:[#allocation2 + $0x8] sm:$0xff]
    %v922 = vld [vmem:[#allocation2 + $0x10] sm:$0xff]
    %v923 = vld [vmem:[#allocation2 + $0x18] sm:$0xff]
    %v924 = vld [vmem:[#allocation2 + $0x20] sm:$0xff]
    %v925 = vld [vmem:[#allocation2 + $0x28] sm:$0xff]
    %v926 = vld [vmem:[#allocation2 + $0x30] sm:$0xff]
    %v927 = vld [vmem:[#allocation2 + $0x38] sm:$0xff]
    %v928 = vld [vmem:[%s4] sm:$0xff]
    %v929 = vld [vmem:[%s4 + $0x8] sm:$0xff]
    %v930 = vld [vmem:[%s4 + $0x10] sm:$0xff]
    %v931 = vld [vmem:[%s4 + $0x18] sm:$0xff]
    %v932 = vld [vmem:[%s5] sm:$0x1]
    %v934 = vlaneseq
    %v935 = vshrl.u32 %v934, 7
    %v936 = vsub.s32 0, %v935
    %v937 = vrot.slane %v932, %v936
    %v940 = vsel %vm43, %v920, 0
    %v943 = vsel %vm43, %v921, 0
    %v946 = vsel %vm43, %v922, 0
    %v949 = vsel %vm43, %v923, 0
    %v952 = vsel %vm43, %v924, 0
    %v955 = vsel %vm43, %v925, 0
    %v958 = vsel %vm43, %v926, 0
    %v961 = vsel %vm43, %v927, 0
    %963 = vmatprep.subr.mxu0 0.0
    %964 = vmatpush1.msra.mxu0 %v928
    %965 = vmatprep.subr.mxu0 0.0
    %966 = vmatpush1.msra.mxu0 %v929
    %967 = vmatprep.subr.mxu0 0.0
    %968 = vmatpush1.msra.mxu0 %v930
    %969 = vmatprep.subr.mxu0 0.0
    %970 = vmatpush1.msra.mxu0 %v931
    %971 = vmatprep.subr.mxu0 0.0
    %972 = vmatpush1.msra.mxu0 0.0
    %973 = vmatprep.subr.mxu0 0.0
    %974 = vmatpush1.msra.mxu0 0.0
    %975 = vmatprep.subr.mxu0 0.0
    %976 = vmatpush1.msra.mxu0 0.0
    %977 = vmatprep.subr.mxu0 0.0
    %978 = vmatpush1.msra.mxu0 0.0
    %979 = vmatprep.subr.mxu0 0.0
    %980 = vmatpush1.msra.mxu0 0.0
    %981 = vmatprep.subr.mxu0 0.0
    %982 = vmatpush1.msra.mxu0 0.0
    %983 = vmatprep.subr.mxu0 0.0
    %984 = vmatpush1.msra.mxu0 0.0
    %985 = vmatprep.subr.mxu0 0.0
    %986 = vmatpush1.msra.mxu0 0.0
    %987 = vmatprep.subr.mxu0 0.0
    %988 = vmatpush1.msra.mxu0 0.0
    %989 = vmatprep.subr.mxu0 0.0
    %990 = vmatpush1.msra.mxu0 0.0
    %991 = vmatprep.subr.mxu0 0.0
    %992 = vmatpush1.msra.mxu0 0.0
    %993 = vmatprep.subr.mxu0 0.0
    %994 = vmatpush1.msra.mxu0 0.0
    %995 = vmatprep.subr.mxu0 0.0
    %996 = vmatpush1.msra.mxu0 0.0
    %997 = vmatprep.subr.mxu0 0.0
    %998 = vmatpush1.msra.mxu0 0.0
    %999 = vmatprep.subr.mxu0 0.0
    %1000 = vmatpush1.msra.mxu0 0.0
    %1001 = vmatprep.subr.mxu0 0.0
    %1002 = vmatpush1.msra.mxu0 0.0
    %1003 = vmatprep.subr.mxu0 0.0
    %1004 = vmatpush1.msra.mxu0 0.0
    %1005 = vmatprep.subr.mxu0 0.0
    %1006 = vmatpush1.msra.mxu0 0.0
    %1007 = vmatprep.subr.mxu0 0.0
    %1008 = vmatpush1.msra.mxu0 0.0
    %1009 = vmatprep.subr.mxu0 0.0
    %1010 = vmatpush1.msra.mxu0 0.0
    %1011 = vmatprep.subr.mxu0 0.0
    %1012 = vmatpush1.msra.mxu0 0.0
    %1013 = vmatprep.subr.mxu0 0.0
    %1014 = vmatpush1.msra.mxu0 0.0
    %1015 = vmatprep.subr.mxu0 0.0
    %1016 = vmatpush1.msra.mxu0 0.0
    %1017 = vmatprep.subr.mxu0 0.0
    %1018 = vmatpush1.msra.mxu0 0.0
    %1019 = vmatprep.subr.mxu0 0.0
    %1020 = vmatpush1.msra.mxu0 0.0
    %1021 = vmatprep.subr.mxu0 0.0
    %1022 = vmatpush1.msra.mxu0 0.0
    %1023 = vmatprep.subr.mxu0 0.0
    %1024 = vmatpush1.msra.mxu0 0.0
    %1025 = vmatprep.subr.mxu0 0.0
    %1026 = vmatpush1.msra.mxu0 0.0
    %1027 = vmatprep.mubr.f32.mxu0 0.0
    %1028 = vmatmul.mubr.f32.gmra.mrb[0].mxu0 %v940
    %v1029 = vpop.f32.mrb[0].mxu0
    %v1030 = vadd.f32 %v937, %v1029
    %v1031 = vpop.f32.mrb[0].mxu0
    %1032 = vmatprep.mubr.f32.mxu0 0.0
    %1033 = vmatmul.mubr.f32.gmra.mrb[0].mxu0 %v943
    %v1034 = vpop.f32.mrb[0].mxu0
    %v1035 = vadd.f32 %v937, %v1034
    %v1036 = vpop.f32.mrb[0].mxu0
    %1037 = vmatprep.mubr.f32.mxu0 0.0
    %1038 = vmatmul.mubr.f32.gmra.mrb[0].mxu0 %v946
    %v1039 = vpop.f32.mrb[0].mxu0
    %v1040 = vadd.f32 %v937, %v1039
    %v1041 = vpop.f32.mrb[0].mxu0
    %1042 = vmatprep.mubr.f32.mxu0 0.0
    %1043 = vmatmul.mubr.f32.gmra.mrb[0].mxu0 %v949
    %v1044 = vpop.f32.mrb[0].mxu0
    %v1045 = vadd.f32 %v937, %v1044
    %v1046 = vpop.f32.mrb[0].mxu0
    %1047 = vmatprep.mubr.f32.mxu0 0.0
    %1048 = vmatmul.mubr.f32.gmra.mrb[0].mxu0 %v952
    %v1049 = vpop.f32.mrb[0].mxu0
    %v1050 = vadd.f32 %v937, %v1049
    %v1051 = vpop.f32.mrb[0].mxu0
    %1052 = vmatprep.mubr.f32.mxu0 0.0
    %1053 = vmatmul.mubr.f32.gmra.mrb[0].mxu0 %v955
    %v1054 = vpop.f32.mrb[0].mxu0
    %v1055 = vadd.f32 %v937, %v1054
    %v1056 = vpop.f32.mrb[0].mxu0
    %1057 = vmatprep.mubr.f32.mxu0 0.0
    %1058 = vmatmul.mubr.f32.gmra.mrb[0].mxu0 %v958
    %v1059 = vpop.f32.mrb[0].mxu0
    %v1060 = vadd.f32 %v937, %v1059
    %v1061 = vpop.f32.mrb[0].mxu0
    %1062 = vmatprep.mubr.f32.mxu0 0.0
    %1063 = vmatmul.mubr.f32.gmra.mrb[0].mxu0 %v961
    %v1064 = vpop.f32.mrb[0].mxu0
    %v1065 = vadd.f32 %v937, %v1064
    %v1066 = vpop.f32.mrb[0].mxu0
    %1067 = vdwg.mxu0
    %1068 = vst [vmem:[#allocation3] sm:$0xff] %v1030
    %1069 = vst [vmem:[#allocation3 + $0x8] sm:$0xff] %v1035
    %1070 = vst [vmem:[#allocation3 + $0x10] sm:$0xff] %v1040
    %1071 = vst [vmem:[#allocation3 + $0x18] sm:$0xff] %v1045
    %1072 = vst [vmem:[#allocation3 + $0x20] sm:$0xff] %v1050
    %1073 = vst [vmem:[#allocation3 + $0x28] sm:$0xff] %v1055
    %1074 = vst [vmem:[#allocation3 + $0x30] sm:$0xff] %v1060
    %1075 = vst [vmem:[#allocation3 + $0x38] sm:$0xff] %v1065
    // Predicated region
    $region26: #{tpu_custom_call.1} parent=1 // pred_check
      _
    $region27: #{tpu_custom_call.1} parent=1 // pred_check_branch
      %1077 = sbr.rel (0) target = $region29
    $region28: #{tpu_custom_call.1} parent=1 // pred_region
      %s1079 = ssub.s32 1024, 1024
      %1080 = vsyncadd [#allocation4], %s1079
      %s1081 = sshll.u32 [#allocation3], 4
      %s1082 = int_to_ptr.vmem [resolvable:$true] %s1081
      %1087 = dma.vmem_to_hbm [thread:$0]  %s1082, 1024, %s6, [#allocation4], 128, 128, 8
    $region29: #{tpu_custom_call.1} parent=1 // pred_fallthru
      _
    // Predicated region
    $region30: #{tpu_custom_call.1} parent=1 // pred_check
      _
    $region31: #{tpu_custom_call.1} parent=1 // pred_check_branch
      %1089 = sbr.rel (0) target = $region33
    $region32: #{tpu_custom_call.1} parent=1 // pred_region
      %1090 = dma.done [#allocation4], 1024
    $region33: #{tpu_custom_call.1} parent=1 // pred_fallthru
      _
    %1091 = vsyncpa [#allocation4], 1

</llo_original>
